<compile_context>
chip_gen: v6e
topology: v6e:2x2x1
jax: 0.10.0
libtpu: 0.0.40
codegen_flags: <defaults>
</compile_context>

<pallas_src>
import jax
import jax.numpy as jnp
from jax.experimental import pallas as pl
from jax.experimental.pallas import tpu as pltpu

LANE = 128


def _round_up(x: int, m: int) -> int:
    return ((x + m - 1) // m) * m


def _vmem_capacity_bytes() -> int:
    try:
        return int(pltpu.get_tpu_info().vmem_capacity_bytes)
    except Exception:
        return 64 << 20  # conservative default = v7x per-TensorCore VMEM


def _pipeline_budget_bytes(cap: int) -> int:
    # ~40 MiB of pipelined buffers on 64 MiB parts (v7x), ~96 MiB on 128 MiB parts
    # (v5e / v6e); always leave headroom for Mosaic internal scratch.
    return max(16 << 20, min(cap - (24 << 20), int(0.75 * cap)))


def _tile_bytes(tm, tn, tk, x_bpe, w_bpe, out_bpe):
    # double-buffered x / w / bias input tiles + f32 accumulator + double-buffered output tile
    return (2 * tm * tk * x_bpe
            + 2 * tk * tn * w_bpe
            + 2 * tn * 4
            + tm * tn * 4
            + 2 * tm * tn * out_bpe)


def _linear_kernel(x_ref, w_ref, b_ref, o_ref, acc_ref):
    k = pl.program_id(2)

    @pl.when(k == 0)
    def _init():
        acc_ref[...] = jnp.zeros_like(acc_ref)

    # bf16 @ bf16 -> f32 accumulation on the MXU.
    acc_ref[...] += jnp.dot(
        x_ref[...], w_ref[...], preferred_element_type=jnp.float32
    )

    # Bias add + downcast only once, on the final K step (epilogue).
    @pl.when(k == pl.num_programs(2) - 1)
    def _epilogue():
        o_ref[...] = (acc_ref[...] + b_ref[...]).astype(o_ref.dtype)


def base_linear_forward(x_pad, w_t_pad, b_pad, out_dtype):
    """(M,K) bf16 @ (K,N) bf16 + (1,N) f32 -> (M,N) out_dtype.  All dims pre-padded to 128."""
    M, K = x_pad.shape
    Kw, N = w_t_pad.shape
    assert K == Kw and b_pad.shape == (1, N)
    assert M % LANE == 0 and N % LANE == 0 and K % LANE == 0

    x_bpe = jnp.dtype(x_pad.dtype).itemsize
    w_bpe = jnp.dtype(w_t_pad.dtype).itemsize
    out_bpe = jnp.dtype(out_dtype).itemsize

    cap = _vmem_capacity_bytes()
    budget = _pipeline_budget_bytes(cap)

    # Full MXU-width row tile; M padding guarantees a multiple of 128.
    tm = 256 if M % 256 == 0 else 128

    # Decode-like (small M, weight-streaming) shapes get longer K tiles so the grid has
    # fewer, larger steps; prefill keeps more balanced tiles.
    tk_top = 4096 if M <= 256 else 2048
    tk_cands = [t for t in (4096, 2048, 1024, 512, 256, 128)
                if t <= tk_top and K % t == 0]
    tn_cands = [t for t in (1024, 512, 256, 128) if N % t == 0]

    best = None
    for tn_c in tn_cands:
        for tk_c in tk_cands:
            if _tile_bytes(tm, tn_c, tk_c, x_bpe, w_bpe, out_bpe) <= budget:
                score = (tn_c * tk_c, tn_c)
                if best is None or score > best[0]:
                    best = (score, tn_c, tk_c)
    if best is None:  # minimal 128-tiles always fit any realistic budget
        tn, tk = tn_cands[-1], tk_cands[-1]
    else:
        tn, tk = best[1], best[2]

    vmem_needed = _tile_bytes(tm, tn, tk, x_bpe, w_bpe, out_bpe)
    vmem_limit = int(min(cap, vmem_needed + (16 << 20)))

    grid_m, grid_n, grid_k = M // tm, N // tn, K // tk

    # Put the larger "parallel" extent first so the megacore-sharded leading axis has
    # extent >= 2 even for small-M decode calls (matters on v7x, harmless elsewhere).
    if grid_m >= grid_n:
        grid = (grid_m, grid_n, grid_k)
        x_map = lambda i, j, k: (i, k)
        w_map = lambda i, j, k: (k, j)
        b_map = lambda i, j, k: (0, j)
        o_map = lambda i, j, k: (i, j)
    else:
        grid = (grid_n, grid_m, grid_k)
        x_map = lambda j, i, k: (i, k)
        w_map = lambda j, i, k: (k, j)
        b_map = lambda j, i, k: (0, j)
        o_map = lambda j, i, k: (i, j)

    cost = pl.CostEstimate(
        flops=2 * M * N * K,
        transcendentals=0,
        bytes_accessed=(M * K * x_bpe + K * N * w_bpe + N * 4 + M * N * out_bpe),
    )

    return pl.pallas_call(
        _linear_kernel,
        out_shape=jax.ShapeDtypeStruct((M, N), out_dtype),
        grid_spec=pltpu.PrefetchScalarGridSpec(
            num_scalar_prefetch=0,
            grid=grid,
            in_specs=[
                pl.BlockSpec((tm, tk), x_map),   # x tile (bf16)
                pl.BlockSpec((tk, tn), w_map),   # w_t tile (bf16)
                pl.BlockSpec((1, tn), b_map),    # bias tile (f32, N only)
            ],
            out_specs=pl.BlockSpec((tm, tn), o_map),
            scratch_shapes=[pltpu.VMEM((tm, tn), jnp.float32)],
        ),
        compiler_params=pltpu.CompilerParams(
            dimension_semantics=("parallel", "parallel", "arbitrary"),
            vmem_limit_bytes=vmem_limit,
        ),
        cost_estimate=cost,
    )(x_pad, w_t_pad, b_pad)


class BaseLayerWithLoRA:
    """JAX/Pallas port of sglang's BaseLayerWithLoRA.

    forward(x) dispatches to the base Linear layer; lora_rank / scaling / segment_gemm are
    stored but unused because set_lora is False in the reference module.
    """

    def __init__(self, base_weight, base_bias, segment_gemm, lora_rank, scaling):
        w = jnp.asarray(base_weight)                    # (out_features, in_features)
        b = jnp.asarray(base_bias, dtype=jnp.float32)   # (out_features,)
        self.out_features, self.in_features = w.shape
        k_pad = _round_up(self.in_features, LANE)
        n_pad = _round_up(self.out_features, LANE)

        # Pre-transpose + zero-pad + bf16-cast ONCE: (in_pad, out_pad) feeds the MXU directly
        # every call with half the HBM weight-streaming traffic of f32 and no per-call copies.
        w_t = jnp.zeros((k_pad, n_pad), dtype=jnp.bfloat16)
        self.base_weight_t = w_t.at[: self.in_features, : self.out_features].set(
            w.T.astype(jnp.bfloat16)
        )
        b2d = jnp.zeros((1, n_pad), dtype=jnp.float32)
        self.base_bias = b2d.at[0, : self.out_features].set(b)

        self.segment_gemm = segment_gemm   # unused placeholder (as in torch module)
        self.lora_rank = lora_rank
        self.scaling = scaling
        self.set_lora = False
        # TODO(synk): set_lora_info is a no-op in the reference module; the LoRA A/B path is
        # never taken in forward, so no LoRA weights are materialized.

    def forward(self, x):
        lead = x.shape[:-1]
        out_dtype = x.dtype
        x2d = x.reshape(-1, x.shape[-1])
        m, k = x2d.shape
        k_pad = self.base_weight_t.shape[0]
        # Pad M to a full MXU tile (multiple of 128) and K to the pre-padded weight K, then
        # cast activations to bf16 (f32 accumulation happens in-kernel).
        m_pad = _round_up(max(m, 1), LANE)
        x_pad = jnp.pad(x2d, ((0, m_pad - m), (0, k_pad - k))).astype(jnp.bfloat16)
        y_pad = base_linear_forward(x_pad, self.base_weight_t, self.base_bias, out_dtype)
        y = y_pad[:m, : self.out_features]
        return y.reshape(*lead, self.out_features)

    def set_lora_info(self, *args):
        pass


if __name__ == "__main__":
    key = jax.random.PRNGKey(0)
    k_x, k_w, k_b, k_x2, k_w2, k_b2 = jax.random.split(key, 6)

    def _bf16(a):
        return a.astype(jnp.bfloat16).astype(jnp.float32)

    # ---- Test 1: small shapes matching the module's toy config (exercises M/K/N padding) ----
    batch, seq, in_features, out_features = 2, 8, 32, 64
    x = jax.random.normal(k_x, (batch, seq, in_features), dtype=jnp.float32)
    weight = jax.random.normal(k_w, (out_features, in_features), dtype=jnp.float32) * 0.05
    bias = jax.random.normal(k_b, (out_features,), dtype=jnp.float32) * 0.01

    layer = BaseLayerWithLoRA(
        base_weight=weight, base_bias=bias,
        segment_gemm=None, lora_rank=16, scaling=1.0,
    )
    y = layer.forward(x)
    jax.block_until_ready(y)

    y_ref = _bf16(x.reshape(-1, in_features)) @ _bf16(weight.T) + bias
    assert y.shape == (batch, seq, out_features)
    assert jnp.allclose(y.reshape(-1, out_features), y_ref, atol=1e-2, rtol=1e-2)

    # ---- Test 2: exercises large-K tiles and the f32 accumulation path ----------------------
    M2, K2, N2 = 256, 4096, 256
    x2 = jax.random.normal(k_x2, (M2, K2), dtype=jnp.float32)
    w2 = jax.random.normal(k_w2, (N2, K2), dtype=jnp.float32) * 0.02
    b2 = jax.random.normal(k_b2, (N2,), dtype=jnp.float32) * 0.01

    layer2 = BaseLayerWithLoRA(
        base_weight=w2, base_bias=b2,
        segment_gemm=None, lora_rank=16, scaling=1.0,
    )
    y2 = layer2.forward(x2)
    jax.block_until_ready(y2)

    y2_ref = _bf16(x2) @ _bf16(w2.T) + b2
    assert y2.shape == (M2, N2)
    assert jnp.allclose(y2, y2_ref, atol=2e-2, rtol=2e-2)

    print("KERNEL_OK")
</pallas_src>

<mosaic_0001>
module attributes {stable_mosaic.version = 11 : i64} {
  func.func @_linear_kernel(%arg0: i32, %arg1: i32, %arg2: i32, %arg3: memref<128x128xbf16, #tpu.memory_space<vmem>>, %arg4: memref<128x128xbf16, #tpu.memory_space<vmem>>, %arg5: memref<1x128xf32, #tpu.memory_space<vmem>>, %arg6: memref<128x128xf32, #tpu.memory_space<vmem>>, %arg7: memref<128x128xf32, #tpu.memory_space<vmem>>) attributes {dimension_semantics = [#tpu.dimension_semantics<parallel>, #tpu.dimension_semantics<parallel>, #tpu.dimension_semantics<arbitrary>], iteration_bounds = array<i64: 1, 1, 1>, scalar_prefetch = 0 : i64, scratch_operands = 1 : i64, tpu.core_type = #tpu.core_type<tc>, window_params = [{transform_indices = @transform_0, window_bounds = array<i64: 128, 128>}, {transform_indices = @transform_1, window_bounds = array<i64: 128, 128>}, {transform_indices = @transform_2, window_bounds = array<i64: 1, 128>}, {transform_indices = @transform_3, window_bounds = array<i64: 128, 128>}]} {
    %c0_i32 = arith.constant 0 : i32
    %0 = arith.cmpi eq, %arg2, %c0_i32 : i32
    %1 = arith.extui %0 : i1 to i32
    %c0_i32_0 = arith.constant 0 : i32
    %2 = arith.cmpi ne, %1, %c0_i32_0 : i32
    scf.if %2 {
      %cst_10 = arith.constant 0.000000e+00 : f32
      %12 = vector.broadcast %cst_10 : f32 to vector<128x128xf32>
      %c0_11 = arith.constant 0 : index
      %c0_12 = arith.constant 0 : index
      %13 = vector.load %arg7[%c0_11, %c0_12] : memref<128x128xf32, #tpu.memory_space<vmem>>, vector<128x128xf32>
      tpu.vector_store %arg7[%c0_11, %c0_12], %12 {strides = array<i32>} : memref<128x128xf32, #tpu.memory_space<vmem>>, vector<128x128xf32>,
    } else {
    }
    %c0 = arith.constant 0 : index
    %c0_1 = arith.constant 0 : index
    %3 = vector.load %arg7[%c0, %c0_1] : memref<128x128xf32, #tpu.memory_space<vmem>>, vector<128x128xf32>
    %c0_2 = arith.constant 0 : index
    %c0_3 = arith.constant 0 : index
    %4 = vector.load %arg3[%c0_2, %c0_3] : memref<128x128xbf16, #tpu.memory_space<vmem>>, vector<128x128xbf16>
    %c0_4 = arith.constant 0 : index
    %c0_5 = arith.constant 0 : index
    %5 = vector.load %arg4[%c0_4, %c0_5] : memref<128x128xbf16, #tpu.memory_space<vmem>>, vector<128x128xbf16>
    %cst = arith.constant dense<0.000000e+00> : vector<128x128xf32>
    %6 = tpu.matmul %4, %5, %cst {dimension_numbers = #tpu.dot_dimension_numbers<[1], [0], [0], [1], [0, 0, 1, 1], [], []>} : vector<128x128xbf16>, vector<128x128xbf16>, vector<128x128xf32> -> vector<128x128xf32>
    %7 = arith.addf %3, %6 : vector<128x128xf32>
    %c0_6 = arith.constant 0 : index
    %c0_7 = arith.constant 0 : index
    %8 = vector.load %arg7[%c0_6, %c0_7] : memref<128x128xf32, #tpu.memory_space<vmem>>, vector<128x128xf32>
    tpu.vector_store %arg7[%c0_6, %c0_7], %7 {strides = array<i32>} : memref<128x128xf32, #tpu.memory_space<vmem>>, vector<128x128xf32>,
    %c0_i32_8 = arith.constant 0 : i32
    %9 = arith.cmpi eq, %arg2, %c0_i32_8 : i32
    %10 = arith.extui %9 : i1 to i32
    %c0_i32_9 = arith.constant 0 : i32
    %11 = arith.cmpi ne, %10, %c0_i32_9 : i32
    scf.if %11 {
      %c0_10 = arith.constant 0 : index
      %c0_11 = arith.constant 0 : index
      %12 = vector.load %arg7[%c0_10, %c0_11] : memref<128x128xf32, #tpu.memory_space<vmem>>, vector<128x128xf32>
      %c0_12 = arith.constant 0 : index
      %c0_13 = arith.constant 0 : index
      %13 = vector.load %arg5[%c0_12, %c0_13] : memref<1x128xf32, #tpu.memory_space<vmem>>, vector<1x128xf32>
      %14 = vector.broadcast %13 : vector<1x128xf32> to vector<128x128xf32>
      %15 = arith.addf %12, %14 : vector<128x128xf32>
      %c0_14 = arith.constant 0 : index
      %c0_15 = arith.constant 0 : index
      %16 = vector.load %arg6[%c0_14, %c0_15] : memref<128x128xf32, #tpu.memory_space<vmem>>, vector<128x128xf32>
      tpu.vector_store %arg6[%c0_14, %c0_15], %15 {strides = array<i32>} : memref<128x128xf32, #tpu.memory_space<vmem>>, vector<128x128xf32>,
    } else {
    }
    return
  }
  func.func @transform_0(%arg0: i32, %arg1: i32, %arg2: i32) -> (i32, i32) {
    %c0_i32 = arith.constant 0 : i32
    return %arg0, %arg2 : i32, i32
  }
  func.func @transform_1(%arg0: i32, %arg1: i32, %arg2: i32) -> (i32, i32) {
    %c0_i32 = arith.constant 0 : i32
    return %arg2, %arg1 : i32, i32
  }
  func.func @transform_2(%arg0: i32, %arg1: i32, %arg2: i32) -> (i32, i32) {
    %c0_i32 = arith.constant 0 : i32
    %c0_i32_0 = arith.constant 0 : i32
    return %c0_i32, %arg1 : i32, i32
  }
  func.func @transform_3(%arg0: i32, %arg1: i32, %arg2: i32) -> (i32, i32) {
    %c0_i32 = arith.constant 0 : i32
    return %arg0, %arg1 : i32, i32
  }
}

</mosaic_0001>

<llo_original>
// kernel: tpu_custom_call.1
$region0: #{tpu_custom_call.1}
  #allocation0 [shape = 'u32[]', space=smem, size = 0x4, offset = 0x4, fixed_abs, tag = 'smem constant byte address 0x4 - core index']
  #allocation1 [shape = 'u32[144,128]{1,0:T(1,128)}', space=vmem, size = 0x12000, scoped, tag = 'internal scratch']
  #allocation2 [shape = 'f32[128,128]{1,0:T(8,128)}', space=vmem, size = 0x10000, scoped, tag = 'scratch operand']
  %s0 = inlined_call_operand.hbm [shape: bf16[128,128], index: 0, kind: input, shape index: {}]
  %s1 = inlined_call_operand.hbm [shape: bf16[128,128], index: 1, kind: input, shape index: {}]
  %s2 = inlined_call_operand.vmem [shape: f32[1,128], index: 2, kind: input, shape index: {}]
  %s3 = inlined_call_operand.hbm [shape: f32[128,128], index: 3, kind: output, shape index: {}]
  %s4 = sld [smem:[#allocation0]]
  $region38: #{tpu_custom_call.1} parent=0
    _
  %s6 = ssub.s32 1, %s4
  %s7 = scalar_select 0, %s6, %s4
  $region1: #{tpu_custom_call.1} parent=0
    #allocation3 [shape = 'u8[32768]{0}', space=vmem, size = 0x8000, scoped, tag = 'input window, operand 0, single buffered']
    #allocation4 [shape = 's32[1]{0}', space=sflag, size = 0x4, scoped, tag = 'scoped memory for tpu_custom_call.1']
    #allocation5 [shape = 's32[1]{0}', space=sflag, size = 0x4, scoped, tag = 'scoped memory for tpu_custom_call.1']
    #allocation6 [shape = 'u8[32768]{0}', space=vmem, size = 0x8000, scoped, tag = 'input window, operand 1, single buffered']
    #allocation7 [shape = 's32[1]{0}', space=sflag, size = 0x4, scoped, tag = 'scoped memory for tpu_custom_call.1']
    #allocation8 [shape = 'u8[65536]{0}', space=vmem, size = 0x10000, scoped, tag = 'output window, operand 0, single buffered']
    %8 = vsyncpa [#allocation4], 0
    %9 = vsyncpa [#allocation7], 0
    %10 = vsyncpa [#allocation5], 0
    // Predicated region
    $region2: #{tpu_custom_call.1} parent=1 // pred_check
      _
    $region3: #{tpu_custom_call.1} parent=1 // pred_check_branch
      %12 = sbr.rel (0) target = $region5
    $region4: #{tpu_custom_call.1} parent=1 // pred_region
      %s14 = ssub.s32 1024, 1024
      %15 = vsyncadd [#allocation4], %s14
      %s16 = sshll.u32 [#allocation3], 4
      %s17 = int_to_ptr.vmem [resolvable:$true] %s16
      %22 = dma.hbm_to_vmem [thread:$0]  %s0, 1024, %s17, [#allocation4], 64, 64, 4
    $region5: #{tpu_custom_call.1} parent=1 // pred_fallthru
      _
    // Predicated region
    $region6: #{tpu_custom_call.1} parent=1 // pred_check
      _
    $region7: #{tpu_custom_call.1} parent=1 // pred_check_branch
      %24 = sbr.rel (0) target = $region9
    $region8: #{tpu_custom_call.1} parent=1 // pred_region
      %s26 = ssub.s32 1024, 1024
      %27 = vsyncadd [#allocation7], %s26
      %s28 = sshll.u32 [#allocation6], 4
      %s29 = int_to_ptr.vmem [resolvable:$true] %s28
      %34 = dma.hbm_to_vmem [thread:$0]  %s1, 1024, %s29, [#allocation7], 64, 64, 4
    $region9: #{tpu_custom_call.1} parent=1 // pred_fallthru
      _
    // Predicated region
    $region10: #{tpu_custom_call.1} parent=1 // pred_check
      _
    $region11: #{tpu_custom_call.1} parent=1 // pred_check_branch
      %36 = sbr.rel (0) target = $region13
    $region12: #{tpu_custom_call.1} parent=1 // pred_region
      _
    $region13: #{tpu_custom_call.1} parent=1 // pred_fallthru
      _
    // Predicated region
    $region14: #{tpu_custom_call.1} parent=1 // pred_check
      _
    $region15: #{tpu_custom_call.1} parent=1 // pred_check_branch
      %38 = sbr.rel (0) target = $region17
    $region16: #{tpu_custom_call.1} parent=1 // pred_region
      %39 = dma.done [#allocation4], 1024
    $region17: #{tpu_custom_call.1} parent=1 // pred_fallthru
      _
    // Predicated region
    $region18: #{tpu_custom_call.1} parent=1 // pred_check
      _
    $region19: #{tpu_custom_call.1} parent=1 // pred_check_branch
      %41 = sbr.rel (0) target = $region21
    $region20: #{tpu_custom_call.1} parent=1 // pred_region
      %42 = dma.done [#allocation7], 1024
    $region21: #{tpu_custom_call.1} parent=1 // pred_fallthru
      _
    %p44 = scmp.eq.s32.totalorder 0, 0
    // Predicated region
    $region22: #{tpu_custom_call.1} parent=1 // pred_check
      %p45 = pneg %p44
    $region23: #{tpu_custom_call.1} parent=1 // pred_check_branch
      %47 = sbr.rel (%p45) target = $region25
    $region24: #{tpu_custom_call.1} parent=1 // pred_region
      %48 = vst [vmem:[#allocation2] sm:$0xff] 0.0
      %49 = vst [vmem:[#allocation2 + $0x8] sm:$0xff] 0.0
      %50 = vst [vmem:[#allocation2 + $0x10] sm:$0xff] 0.0
      %51 = vst [vmem:[#allocation2 + $0x18] sm:$0xff] 0.0
      %52 = vst [vmem:[#allocation2 + $0x20] sm:$0xff] 0.0
      %53 = vst [vmem:[#allocation2 + $0x28] sm:$0xff] 0.0
      %54 = vst [vmem:[#allocation2 + $0x30] sm:$0xff] 0.0
      %55 = vst [vmem:[#allocation2 + $0x38] sm:$0xff] 0.0
      %56 = vst [vmem:[#allocation2 + $0x40] sm:$0xff] 0.0
      %57 = vst [vmem:[#allocation2 + $0x48] sm:$0xff] 0.0
      %58 = vst [vmem:[#allocation2 + $0x50] sm:$0xff] 0.0
      %59 = vst [vmem:[#allocation2 + $0x58] sm:$0xff] 0.0
      %60 = vst [vmem:[#allocation2 + $0x60] sm:$0xff] 0.0
      %61 = vst [vmem:[#allocation2 + $0x68] sm:$0xff] 0.0
      %62 = vst [vmem:[#allocation2 + $0x70] sm:$0xff] 0.0
      %63 = vst [vmem:[#allocation2 + $0x78] sm:$0xff] 0.0
    $region25: #{tpu_custom_call.1} parent=1 // pred_fallthru
      _
    %v64 = vld [vmem:[#allocation2] sm:$0xff]
    %v65 = vld [vmem:[#allocation2 + $0x8] sm:$0xff]
    %v66 = vld [vmem:[#allocation2 + $0x10] sm:$0xff]
    %v67 = vld [vmem:[#allocation2 + $0x18] sm:$0xff]
    %v68 = vld [vmem:[#allocation2 + $0x20] sm:$0xff]
    %v69 = vld [vmem:[#allocation2 + $0x28] sm:$0xff]
    %v70 = vld [vmem:[#allocation2 + $0x30] sm:$0xff]
    %v71 = vld [vmem:[#allocation2 + $0x38] sm:$0xff]
    %v72 = vld [vmem:[#allocation2 + $0x40] sm:$0xff]
    %v73 = vld [vmem:[#allocation2 + $0x48] sm:$0xff]
    %v74 = vld [vmem:[#allocation2 + $0x50] sm:$0xff]
    %v75 = vld [vmem:[#allocation2 + $0x58] sm:$0xff]
    %v76 = vld [vmem:[#allocation2 + $0x60] sm:$0xff]
    %v77 = vld [vmem:[#allocation2 + $0x68] sm:$0xff]
    %v78 = vld [vmem:[#allocation2 + $0x70] sm:$0xff]
    %v79 = vld [vmem:[#allocation2 + $0x78] sm:$0xff]
    %v80 = vld [vmem:[#allocation3] sm:$0xf]
    %v81 = vld [vmem:[#allocation3 + $0x4] sm:$0xf]
    %v82 = vld [vmem:[#allocation3 + $0x8] sm:$0xf]
    %v83 = vld [vmem:[#allocation3 + $0xc] sm:$0xf]
    %v84 = vld [vmem:[#allocation3 + $0x10] sm:$0xf]
    %v85 = vld [vmem:[#allocation3 + $0x14] sm:$0xf]
    %v86 = vld [vmem:[#allocation3 + $0x18] sm:$0xf]
    %v87 = vld [vmem:[#allocation3 + $0x1c] sm:$0xf]
    %v88 = vld [vmem:[#allocation3 + $0x20] sm:$0xf]
    %v89 = vld [vmem:[#allocation3 + $0x24] sm:$0xf]
    %v90 = vld [vmem:[#allocation3 + $0x28] sm:$0xf]
    %v91 = vld [vmem:[#allocation3 + $0x2c] sm:$0xf]
    %v92 = vld [vmem:[#allocation3 + $0x30] sm:$0xf]
    %v93 = vld [vmem:[#allocation3 + $0x34] sm:$0xf]
    %v94 = vld [vmem:[#allocation3 + $0x38] sm:$0xf]
    %v95 = vld [vmem:[#allocation3 + $0x3c] sm:$0xf]
    %v96 = vld [vmem:[#allocation6] sm:$0xf]
    %v97 = vld [vmem:[#allocation6 + $0x4] sm:$0xf]
    %v98 = vld [vmem:[#allocation6 + $0x8] sm:$0xf]
    %v99 = vld [vmem:[#allocation6 + $0xc] sm:$0xf]
    %v100 = vld [vmem:[#allocation6 + $0x10] sm:$0xf]
    %v101 = vld [vmem:[#allocation6 + $0x14] sm:$0xf]
    %v102 = vld [vmem:[#allocation6 + $0x18] sm:$0xf]
    %v103 = vld [vmem:[#allocation6 + $0x1c] sm:$0xf]
    %v104 = vld [vmem:[#allocation6 + $0x20] sm:$0xf]
    %v105 = vld [vmem:[#allocation6 + $0x24] sm:$0xf]
    %v106 = vld [vmem:[#allocation6 + $0x28] sm:$0xf]
    %v107 = vld [vmem:[#allocation6 + $0x2c] sm:$0xf]
    %v108 = vld [vmem:[#allocation6 + $0x30] sm:$0xf]
    %v109 = vld [vmem:[#allocation6 + $0x34] sm:$0xf]
    %v110 = vld [vmem:[#allocation6 + $0x38] sm:$0xf]
    %v111 = vld [vmem:[#allocation6 + $0x3c] sm:$0xf]
    %v128 = vunpack.c.l.b16 %v80
    %v129 = vunpack.c.l.b16 %v81
    %v130 = vunpack.c.l.b16 %v82
    %v131 = vunpack.c.l.b16 %v83
    %v132 = vunpack.c.l.b16 %v84
    %v133 = vunpack.c.l.b16 %v85
    %v134 = vunpack.c.l.b16 %v86
    %v135 = vunpack.c.l.b16 %v87
    %v136 = vunpack.c.l.b16 %v88
    %v137 = vunpack.c.l.b16 %v89
    %v138 = vunpack.c.l.b16 %v90
    %v139 = vunpack.c.l.b16 %v91
    %v140 = vunpack.c.l.b16 %v92
    %v141 = vunpack.c.l.b16 %v93
    %v142 = vunpack.c.l.b16 %v94
    %v143 = vunpack.c.l.b16 %v95
    %v144 = vpack.c.b16 %v129, %v128
    %v145 = vpack.c.b16 %v131, %v130
    %v146 = vpack.c.b16 %v133, %v132
    %v147 = vpack.c.b16 %v135, %v134
    %v148 = vpack.c.b16 %v137, %v136
    %v149 = vpack.c.b16 %v139, %v138
    %v150 = vpack.c.b16 %v141, %v140
    %v151 = vpack.c.b16 %v143, %v142
    %v176 = vunpack.c.l.b16 %v96
    %v177 = vunpack.c.l.b16 %v97
    %v178 = vunpack.c.l.b16 %v98
    %v179 = vunpack.c.l.b16 %v99
    %v180 = vunpack.c.l.b16 %v100
    %v181 = vunpack.c.l.b16 %v101
    %v182 = vunpack.c.l.b16 %v102
    %v183 = vunpack.c.l.b16 %v103
    %v184 = vunpack.c.l.b16 %v104
    %v185 = vunpack.c.l.b16 %v105
    %v186 = vunpack.c.l.b16 %v106
    %v187 = vunpack.c.l.b16 %v107
    %v188 = vunpack.c.l.b16 %v108
    %v189 = vunpack.c.l.b16 %v109
    %v190 = vunpack.c.l.b16 %v110
    %v191 = vunpack.c.l.b16 %v111
    %v192 = vpack.c.b16 %v177, %v176
    %v193 = vpack.c.b16 %v179, %v178
    %v194 = vpack.c.b16 %v181, %v180
    %v195 = vpack.c.b16 %v183, %v182
    %v196 = vpack.c.b16 %v185, %v184
    %v197 = vpack.c.b16 %v187, %v186
    %v198 = vpack.c.b16 %v189, %v188
    %v199 = vpack.c.b16 %v191, %v190
    %208 = vmatprep.subr.bf16.mxu0 0
    %209 = vmatpush1.bf16.msra.mxu0 %v199
    %210 = vmatprep.subr.bf16.mxu0 0
    %211 = vmatpush1.bf16.msra.mxu0 %v198
    %212 = vmatprep.subr.bf16.mxu0 0
    %213 = vmatpush1.bf16.msra.mxu0 %v197
    %214 = vmatprep.subr.bf16.mxu0 0
    %215 = vmatpush1.bf16.msra.mxu0 %v196
    %216 = vmatprep.subr.bf16.mxu0 0
    %217 = vmatpush1.bf16.msra.mxu0 %v195
    %218 = vmatprep.subr.bf16.mxu0 0
    %219 = vmatpush1.bf16.msra.mxu0 %v194
    %220 = vmatprep.subr.bf16.mxu0 0
    %221 = vmatpush1.bf16.msra.mxu0 %v193
    %222 = vmatprep.subr.bf16.mxu0 0
    %223 = vmatpush1.bf16.msra.mxu0 %v192
    %224 = vmatprep.subr.bf16.mxu0 0
    %225 = vmatpush2.bf16.msra.mxu0 0
    %226 = vmatprep.subr.bf16.mxu0 0
    %227 = vmatpush2.bf16.msra.mxu0 0
    %228 = vmatprep.subr.bf16.mxu0 0
    %229 = vmatpush2.bf16.msra.mxu0 0
    %230 = vmatprep.subr.bf16.mxu0 0
    %231 = vmatpush2.bf16.msra.mxu0 0
    %232 = vmatprep.subr.bf16.mxu0 0
    %233 = vmatpush2.bf16.msra.mxu0 0
    %234 = vmatprep.subr.bf16.mxu0 0
    %235 = vmatpush2.bf16.msra.mxu0 0
    %236 = vmatprep.subr.bf16.mxu0 0
    %237 = vmatpush2.bf16.msra.mxu0 0
    %238 = vmatprep.subr.bf16.mxu0 0
    %239 = vmatpush2.bf16.msra.mxu0 0
    %240 = vmatprep.mubr.bf16.mxu0 0
    %241 = vmatmul.mubr.bf16.gmra.mxu0 %v144
    %v242 = vpop.f32.mrf.mxu0
    %v243 = vadd.f32 0.0, %v242
    %v244 = vpop.f32.mrf.mxu0
    %v245 = vpop.f32.mrf.mxu0
    %v246 = vadd.f32 0.0, %v245
    %v247 = vpop.f32.mrf.mxu0
    %248 = vmatprep.mubr.bf16.mxu0 0
    %249 = vmatmul.mubr.bf16.gmra.mxu0 %v145
    %v250 = vpop.f32.mrf.mxu0
    %v251 = vadd.f32 0.0, %v250
    %v252 = vpop.f32.mrf.mxu0
    %v253 = vpop.f32.mrf.mxu0
    %v254 = vadd.f32 0.0, %v253
    %v255 = vpop.f32.mrf.mxu0
    %256 = vmatprep.mubr.bf16.mxu0 0
    %257 = vmatmul.mubr.bf16.gmra.mxu0 %v146
    %v258 = vpop.f32.mrf.mxu0
    %v259 = vadd.f32 0.0, %v258
    %v260 = vpop.f32.mrf.mxu0
    %v261 = vpop.f32.mrf.mxu0
    %v262 = vadd.f32 0.0, %v261
    %v263 = vpop.f32.mrf.mxu0
    %264 = vmatprep.mubr.bf16.mxu0 0
    %265 = vmatmul.mubr.bf16.gmra.mxu0 %v147
    %v266 = vpop.f32.mrf.mxu0
    %v267 = vadd.f32 0.0, %v266
    %v268 = vpop.f32.mrf.mxu0
    %v269 = vpop.f32.mrf.mxu0
    %v270 = vadd.f32 0.0, %v269
    %v271 = vpop.f32.mrf.mxu0
    %272 = vmatprep.mubr.bf16.mxu0 0
    %273 = vmatmul.mubr.bf16.gmra.mxu0 %v148
    %v274 = vpop.f32.mrf.mxu0
    %v275 = vadd.f32 0.0, %v274
    %v276 = vpop.f32.mrf.mxu0
    %v277 = vpop.f32.mrf.mxu0
    %v278 = vadd.f32 0.0, %v277
    %v279 = vpop.f32.mrf.mxu0
    %280 = vmatprep.mubr.bf16.mxu0 0
    %281 = vmatmul.mubr.bf16.gmra.mxu0 %v149
    %v282 = vpop.f32.mrf.mxu0
    %v283 = vadd.f32 0.0, %v282
    %v284 = vpop.f32.mrf.mxu0
    %v285 = vpop.f32.mrf.mxu0
    %v286 = vadd.f32 0.0, %v285
    %v287 = vpop.f32.mrf.mxu0
    %288 = vmatprep.mubr.bf16.mxu0 0
    %289 = vmatmul.mubr.bf16.gmra.mxu0 %v150
    %v290 = vpop.f32.mrf.mxu0
    %v291 = vadd.f32 0.0, %v290
    %v292 = vpop.f32.mrf.mxu0
    %v293 = vpop.f32.mrf.mxu0
    %v294 = vadd.f32 0.0, %v293
    %v295 = vpop.f32.mrf.mxu0
    %296 = vmatprep.mubr.bf16.mxu0 0
    %297 = vmatmul.mubr.bf16.gmra.mxu0 %v151
    %v298 = vpop.f32.mrf.mxu0
    %v299 = vadd.f32 0.0, %v298
    %v300 = vpop.f32.mrf.mxu0
    %v301 = vpop.f32.mrf.mxu0
    %v302 = vadd.f32 0.0, %v301
    %v303 = vpop.f32.mrf.mxu0
    %304 = vdwg.mxu0
    %v305 = vadd.f32 %v64, %v243
    %v306 = vadd.f32 %v65, %v246
    %v307 = vadd.f32 %v66, %v251
    %v308 = vadd.f32 %v67, %v254
    %v309 = vadd.f32 %v68, %v259
    %v310 = vadd.f32 %v69, %v262
    %v311 = vadd.f32 %v70, %v267
    %v312 = vadd.f32 %v71, %v270
    %v313 = vadd.f32 %v72, %v275
    %v314 = vadd.f32 %v73, %v278
    %v315 = vadd.f32 %v74, %v283
    %v316 = vadd.f32 %v75, %v286
    %v317 = vadd.f32 %v76, %v291
    %v318 = vadd.f32 %v77, %v294
    %v319 = vadd.f32 %v78, %v299
    %v320 = vadd.f32 %v79, %v302
    %321 = vst [vmem:[#allocation2] sm:$0xff] %v305
    %322 = vst [vmem:[#allocation2 + $0x8] sm:$0xff] %v306
    %323 = vst [vmem:[#allocation2 + $0x10] sm:$0xff] %v307
    %324 = vst [vmem:[#allocation2 + $0x18] sm:$0xff] %v308
    %325 = vst [vmem:[#allocation2 + $0x20] sm:$0xff] %v309
    %326 = vst [vmem:[#allocation2 + $0x28] sm:$0xff] %v310
    %327 = vst [vmem:[#allocation2 + $0x30] sm:$0xff] %v311
    %328 = vst [vmem:[#allocation2 + $0x38] sm:$0xff] %v312
    %329 = vst [vmem:[#allocation2 + $0x40] sm:$0xff] %v313
    %330 = vst [vmem:[#allocation2 + $0x48] sm:$0xff] %v314
    %331 = vst [vmem:[#allocation2 + $0x50] sm:$0xff] %v315
    %332 = vst [vmem:[#allocation2 + $0x58] sm:$0xff] %v316
    %333 = vst [vmem:[#allocation2 + $0x60] sm:$0xff] %v317
    %334 = vst [vmem:[#allocation2 + $0x68] sm:$0xff] %v318
    %335 = vst [vmem:[#allocation2 + $0x70] sm:$0xff] %v319
    %336 = vst [vmem:[#allocation2 + $0x78] sm:$0xff] %v320
    // Predicated region
    $region26: #{tpu_custom_call.1} parent=1 // pred_check
      %p337 = pneg %p44
    $region27: #{tpu_custom_call.1} parent=1 // pred_check_branch
      %339 = sbr.rel (%p337) target = $region29
    $region28: #{tpu_custom_call.1} parent=1 // pred_region
      %v340 = vld [vmem:[#allocation2] sm:$0xff]
      %v341 = vld [vmem:[#allocation2 + $0x8] sm:$0xff]
      %v342 = vld [vmem:[#allocation2 + $0x10] sm:$0xff]
      %v343 = vld [vmem:[#allocation2 + $0x18] sm:$0xff]
      %v344 = vld [vmem:[#allocation2 + $0x20] sm:$0xff]
      %v345 = vld [vmem:[#allocation2 + $0x28] sm:$0xff]
      %v346 = vld [vmem:[#allocation2 + $0x30] sm:$0xff]
      %v347 = vld [vmem:[#allocation2 + $0x38] sm:$0xff]
      %v348 = vld [vmem:[#allocation2 + $0x40] sm:$0xff]
      %v349 = vld [vmem:[#allocation2 + $0x48] sm:$0xff]
      %v350 = vld [vmem:[#allocation2 + $0x50] sm:$0xff]
      %v351 = vld [vmem:[#allocation2 + $0x58] sm:$0xff]
      %v352 = vld [vmem:[#allocation2 + $0x60] sm:$0xff]
      %v353 = vld [vmem:[#allocation2 + $0x68] sm:$0xff]
      %v354 = vld [vmem:[#allocation2 + $0x70] sm:$0xff]
      %v355 = vld [vmem:[#allocation2 + $0x78] sm:$0xff]
      %v356 = vld [vmem:[%s2] sm:$0x1]
      %v358 = vlaneseq
      %v359 = vshrl.u32 %v358, 7
      %v360 = vsub.s32 0, %v359
      %v361 = vrot.slane %v356, %v360
      %v363 = vadd.f32 %v340, %v361
      %v364 = vadd.f32 %v341, %v361
      %v365 = vadd.f32 %v342, %v361
      %v366 = vadd.f32 %v343, %v361
      %v367 = vadd.f32 %v344, %v361
      %v368 = vadd.f32 %v345, %v361
      %v369 = vadd.f32 %v346, %v361
      %v370 = vadd.f32 %v347, %v361
      %v371 = vadd.f32 %v348, %v361
      %v372 = vadd.f32 %v349, %v361
      %v373 = vadd.f32 %v350, %v361
      %v374 = vadd.f32 %v351, %v361
      %v375 = vadd.f32 %v352, %v361
      %v376 = vadd.f32 %v353, %v361
      %v377 = vadd.f32 %v354, %v361
      %v378 = vadd.f32 %v355, %v361
      %379 = vst [vmem:[#allocation8] sm:$0xff] %v363
      %380 = vst [vmem:[#allocation8 + $0x8] sm:$0xff] %v364
      %381 = vst [vmem:[#allocation8 + $0x10] sm:$0xff] %v365
      %382 = vst [vmem:[#allocation8 + $0x18] sm:$0xff] %v366
      %383 = vst [vmem:[#allocation8 + $0x20] sm:$0xff] %v367
      %384 = vst [vmem:[#allocation8 + $0x28] sm:$0xff] %v368
      %385 = vst [vmem:[#allocation8 + $0x30] sm:$0xff] %v369
      %386 = vst [vmem:[#allocation8 + $0x38] sm:$0xff] %v370
      %387 = vst [vmem:[#allocation8 + $0x40] sm:$0xff] %v371
      %388 = vst [vmem:[#allocation8 + $0x48] sm:$0xff] %v372
      %389 = vst [vmem:[#allocation8 + $0x50] sm:$0xff] %v373
      %390 = vst [vmem:[#allocation8 + $0x58] sm:$0xff] %v374
      %391 = vst [vmem:[#allocation8 + $0x60] sm:$0xff] %v375
      %392 = vst [vmem:[#allocation8 + $0x68] sm:$0xff] %v376
      %393 = vst [vmem:[#allocation8 + $0x70] sm:$0xff] %v377
      %394 = vst [vmem:[#allocation8 + $0x78] sm:$0xff] %v378
    $region29: #{tpu_custom_call.1} parent=1 // pred_fallthru
      _
    // Predicated region
    $region30: #{tpu_custom_call.1} parent=1 // pred_check
      _
    $region31: #{tpu_custom_call.1} parent=1 // pred_check_branch
      %396 = sbr.rel (0) target = $region33
    $region32: #{tpu_custom_call.1} parent=1 // pred_region
      %s398 = ssub.s32 2048, 2048
      %399 = vsyncadd [#allocation5], %s398
      %s400 = sshll.u32 [#allocation8], 4
      %s401 = int_to_ptr.vmem [resolvable:$true] %s400
      %406 = dma.vmem_to_hbm [thread:$0]  %s401, 2048, %s3, [#allocation5], 128, 128, 8
    $region33: #{tpu_custom_call.1} parent=1 // pred_fallthru
      _
    // Predicated region
    $region34: #{tpu_custom_call.1} parent=1 // pred_check
      _
    $region35: #{tpu_custom_call.1} parent=1 // pred_check_branch
      %408 = sbr.rel (0) target = $region37
    $region36: #{tpu_custom_call.1} parent=1 // pred_region
      %409 = dma.done [#allocation5], 2048
    $region37: #{tpu_custom_call.1} parent=1 // pred_fallthru
      _
    %410 = vsyncpa [#allocation4], 1
    %411 = vsyncpa [#allocation7], 1
    %412 = vsyncpa [#allocation5], 1

</llo_original>
